<compile_context>
chip_gen: v6e
topology: v6e:2x2x1
jax: 0.10.0
libtpu: 0.0.40
codegen_flags: <defaults>
</compile_context>

<pallas_src>
import functools
import math

import jax
import jax.numpy as jnp
from jax.experimental import pallas as pl
from jax.experimental.pallas import tpu as pltpu

DROPOUT = 0.1
HIDDEN_SIZE = 128
D_MODEL = HIDDEN_SIZE
MAX_LEN = 5000


def make_pe_table(max_len: int, d_model: int) -> jnp.ndarray:
    """Deterministic sinusoidal PE buffer, shape (1, max_len, d_model), float32."""
    position = jnp.arange(max_len, dtype=jnp.float32)[:, None]          # (L, 1)
    div_term = jnp.exp(
        jnp.arange(0, d_model, 2, dtype=jnp.float32) * (-math.log(10000.0) / d_model)
    )                                                                    # (D/2,)
    pe = jnp.zeros((max_len, d_model), dtype=jnp.float32)
    pe = pe.at[:, 0::2].set(jnp.sin(position * div_term))
    pe = pe.at[:, 1::2].set(jnp.cos(position * div_term))
    return pe[None]                                                      # (1, L, D)


def _pe_add_kernel(x_ref, pe_ref, o_ref):
    # x_ref: (B, TS, D); pe_ref: (1, TS, D) -> broadcasts over the batch axis.
    o_ref[...] = (x_ref[...] + pe_ref[...]).astype(o_ref.dtype)


def _pe_add_dropout_kernel(seed_ref, x_ref, pe_ref, o_ref, *, p: float):
    y = x_ref[...] + pe_ref[...]                                  # (B, TS, D), x.dtype
    # Unique seed per seq-tile so the mask never repeats within one call.
    # TODO(synk): mask depends on the tiling (TS); not bit-reproducible across
    #             tile-size changes and will never bit-match torch's RNG.
    pltpu.prng_seed(seed_ref[0] + pl.program_id(0))
    bits = pltpu.bitcast(pltpu.prng_random_bits(y.shape), jnp.uint32)
    # keep with prob (1 - p): compare raw bits against an integer threshold.
    threshold = jnp.uint32(min(int(round(p * float(1 << 32))), (1 << 32) - 1))
    keep = bits >= threshold
    scale = jnp.asarray(1.0 / (1.0 - p), dtype=y.dtype)
    o_ref[...] = jnp.where(keep, y * scale, jnp.zeros((), y.dtype)).astype(o_ref.dtype)


def positional_encoding_forward(x, pe_table, *, seed: int = 0,
                                dropout_p: float = DROPOUT, train: bool = False):
    """x: (B, S, D); pe_table: (1, max_len, D) float32. Returns (B, S, D) in x.dtype."""
    B, S, D = x.shape
    assert pe_table.ndim == 3 and pe_table.shape[0] == 1 and pe_table.shape[2] == D
    assert S <= pe_table.shape[1]

    itemsize = jnp.dtype(x.dtype).itemsize
    sub = 8 * max(1, 4 // itemsize)   # sublane multiple: 8 (f32) / 16 (bf16) / 32 (int8)

    # Sequence tile: batch is folded into the block, so only seq is tiled.
    # VMEM budget: 2 bufs each for x, out, pe => 2*TS*D*itemsize*(2B+1) bytes;
    # keep <= ~12 MiB so it fits v5e's 16 MiB default scoped VMEM without flags.
    budget = 12 * 1024 * 1024
    ts_cap = max(1, budget // (2 * D * itemsize * (2 * B + 1)))
    if S <= sub:
        TS = S                                   # full-dim block: always layout-legal
    else:
        TS = max(sub, (min(S, 2048, ts_cap) // sub) * sub)
    num_s = pl.cdiv(S, TS)                       # ragged last tile is fine (masked writes)

    pe_in = pe_table.astype(x.dtype)             # ship PE in x's dtype (halves bf16 read)
    if TS % sub != 0:
        # Tiny unaligned S: TS == S, so slice PE once so its block equals the
        # (sliced) full dim and satisfies the layout rule. Few-KiB copy.
        pe_in = pe_in[:, :S, :]

    in_specs = [
        pl.BlockSpec((B, TS, D), lambda s, *_: (0, s, 0)),   # x
        pl.BlockSpec((1, TS, D), lambda s, *_: (0, s, 0)),   # pe (shared across batch)
    ]
    out_spec = pl.BlockSpec((B, TS, D), lambda s, *_: (0, s, 0))
    out_shape = jax.ShapeDtypeStruct((B, S, D), x.dtype)
    cparams = pltpu.CompilerParams(dimension_semantics=("parallel",))

    if train and dropout_p > 0.0:
        kernel = functools.partial(_pe_add_dropout_kernel, p=float(dropout_p))
        grid_spec = pltpu.PrefetchScalarGridSpec(
            num_scalar_prefetch=1,               # seed lands in SMEM
            grid=(num_s,),
            in_specs=in_specs,
            out_specs=out_spec,
        )
        seed_arr = jnp.array([seed], dtype=jnp.int32)
        return pl.pallas_call(kernel, out_shape=out_shape, grid_spec=grid_spec,
                              compiler_params=cparams)(seed_arr, x, pe_in)

    # Eval path: dropout is identity -> no seed / scalar prefetch at all.
    grid_spec = pltpu.PrefetchScalarGridSpec(
        num_scalar_prefetch=0,
        grid=(num_s,),
        in_specs=in_specs,
        out_specs=out_spec,
    )
    return pl.pallas_call(_pe_add_kernel, out_shape=out_shape, grid_spec=grid_spec,
                          compiler_params=cparams)(x, pe_in)


if __name__ == "__main__":
    B, S, D = 2, 8, D_MODEL  # small seq, d_model = HIDDEN_SIZE = 128

    key = jax.random.PRNGKey(0)
    x = jax.random.normal(key, (B, S, D), dtype=jnp.float32)

    pe_table = make_pe_table(MAX_LEN, D)

    # Eval-mode forward (dropout is identity) — check against pure-JAX reference.
    y_eval = positional_encoding_forward(x, pe_table, train=False)
    y_eval = jax.block_until_ready(y_eval)
    ref = x + pe_table[:, :S, :]
    assert y_eval.shape == (B, S, D)
    assert jnp.allclose(y_eval, ref, atol=1e-6, rtol=1e-6), "mismatch vs reference"

    # Train-mode forward uses the TPU hardware PRNG, which has no CPU/interpret
    # lowering — only exercise it on real TPU hardware.
    if jax.default_backend() == "tpu":
        y_train = positional_encoding_forward(x, pe_table, seed=0, train=True)
        y_train = jax.block_until_ready(y_train)
        assert y_train.shape == (B, S, D)
        zero_frac = float(jnp.mean((y_train == 0.0).astype(jnp.float32)))
        assert zero_frac < 0.5, f"dropout zeroed too much ({zero_frac})"
        # Surviving elements must equal (x + pe) / (1 - p).
        kept = y_train != 0.0
        assert jnp.allclose(jnp.where(kept, y_train, 0.0),
                            jnp.where(kept, ref / (1.0 - DROPOUT), 0.0),
                            atol=1e-5, rtol=1e-5), "kept elements not scaled correctly"

    print("KERNEL_OK")
</pallas_src>

<mosaic_0001>
module attributes {stable_mosaic.version = 11 : i64} {
  func.func @_pe_add_kernel(%arg0: i32, %arg1: memref<2x8x128xf32, #tpu.memory_space<vmem>>, %arg2: memref<1x8x128xf32, #tpu.memory_space<vmem>>, %arg3: memref<2x8x128xf32, #tpu.memory_space<vmem>>) attributes {dimension_semantics = [#tpu.dimension_semantics<parallel>], iteration_bounds = array<i64: 1>, scalar_prefetch = 0 : i64, scratch_operands = 0 : i64, tpu.core_type = #tpu.core_type<tc>, window_params = [{transform_indices = @transform_0, window_bounds = array<i64: 2, 8, 128>}, {transform_indices = @transform_1, window_bounds = array<i64: 1, 8, 128>}, {transform_indices = @transform_2, window_bounds = array<i64: 2, 8, 128>}]} {
    %c0 = arith.constant 0 : index
    %c0_0 = arith.constant 0 : index
    %c0_1 = arith.constant 0 : index
    %0 = vector.load %arg1[%c0, %c0_0, %c0_1] : memref<2x8x128xf32, #tpu.memory_space<vmem>>, vector<2x8x128xf32>
    %c0_2 = arith.constant 0 : index
    %c0_3 = arith.constant 0 : index
    %c0_4 = arith.constant 0 : index
    %1 = vector.load %arg2[%c0_2, %c0_3, %c0_4] : memref<1x8x128xf32, #tpu.memory_space<vmem>>, vector<1x8x128xf32>
    %2 = vector.broadcast %1 : vector<1x8x128xf32> to vector<2x8x128xf32>
    %3 = arith.addf %0, %2 : vector<2x8x128xf32>
    %c0_5 = arith.constant 0 : index
    %c0_6 = arith.constant 0 : index
    %c0_7 = arith.constant 0 : index
    %4 = vector.load %arg3[%c0_5, %c0_6, %c0_7] : memref<2x8x128xf32, #tpu.memory_space<vmem>>, vector<2x8x128xf32>
    tpu.vector_store %arg3[%c0_5, %c0_6, %c0_7], %3 {strides = array<i32>} : memref<2x8x128xf32, #tpu.memory_space<vmem>>, vector<2x8x128xf32>,
    return
  }
  func.func @transform_0(%arg0: i32) -> (i32, i32, i32) {
    %c0_i32 = arith.constant 0 : i32
    %c0_i32_0 = arith.constant 0 : i32
    %c0_i32_1 = arith.constant 0 : i32
    return %c0_i32, %arg0, %c0_i32_0 : i32, i32, i32
  }
  func.func @transform_1(%arg0: i32) -> (i32, i32, i32) {
    %c0_i32 = arith.constant 0 : i32
    %c0_i32_0 = arith.constant 0 : i32
    %c0_i32_1 = arith.constant 0 : i32
    return %c0_i32, %arg0, %c0_i32_0 : i32, i32, i32
  }
  func.func @transform_2(%arg0: i32) -> (i32, i32, i32) {
    %c0_i32 = arith.constant 0 : i32
    %c0_i32_0 = arith.constant 0 : i32
    %c0_i32_1 = arith.constant 0 : i32
    return %c0_i32, %arg0, %c0_i32_0 : i32, i32, i32
  }
}

</mosaic_0001>

<llo_original>
// kernel: tpu_custom_call.1
$region0: #{tpu_custom_call.1}
  #allocation0 [shape = 'u32[]', space=smem, size = 0x4, offset = 0x4, fixed_abs, tag = 'smem constant byte address 0x4 - core index']
  #allocation1 [shape = 'u32[144,128]{1,0:T(1,128)}', space=vmem, size = 0x12000, scoped, tag = 'internal scratch']
  %s0 = inlined_call_operand.hbm [shape: f32[2,8,128], index: 0, kind: input, shape index: {}]
  %s1 = inlined_call_operand.hbm [shape: f32[1,5000,128], index: 1, kind: input, shape index: {}]
  %s2 = inlined_call_operand.hbm [shape: f32[2,8,128], index: 2, kind: output, shape index: {}]
  %s3 = sld [smem:[#allocation0]]
  $region26: #{tpu_custom_call.1} parent=0
    _
  %s5 = ssub.s32 1, %s3
  %s6 = scalar_select 0, %s5, %s3
  $region1: #{tpu_custom_call.1} parent=0
    #allocation2 [shape = 'u8[8192]{0}', space=vmem, size = 0x2000, scoped, tag = 'input window, operand 0, single buffered']
    #allocation3 [shape = 's32[1]{0}', space=sflag, size = 0x4, scoped, tag = 'scoped memory for tpu_custom_call.1']
    #allocation4 [shape = 's32[1]{0}', space=sflag, size = 0x4, scoped, tag = 'scoped memory for tpu_custom_call.1']
    #allocation5 [shape = 'u8[4096]{0}', space=vmem, size = 0x1000, scoped, tag = 'input window, operand 1, single buffered']
    #allocation6 [shape = 's32[1]{0}', space=sflag, size = 0x4, scoped, tag = 'scoped memory for tpu_custom_call.1']
    #allocation7 [shape = 'u8[8192]{0}', space=vmem, size = 0x2000, scoped, tag = 'output window, operand 0, single buffered']
    %7 = vsyncpa [#allocation3], 0
    %8 = vsyncpa [#allocation6], 0
    %9 = vsyncpa [#allocation4], 0
    // Predicated region
    $region2: #{tpu_custom_call.1} parent=1 // pred_check
      _
    $region3: #{tpu_custom_call.1} parent=1 // pred_check_branch
      %11 = sbr.rel (0) target = $region5
    $region4: #{tpu_custom_call.1} parent=1 // pred_region
      %s13 = ssub.s32 256, 256
      %14 = vsyncadd [#allocation3], %s13
      %s15 = sshll.u32 [#allocation2], 4
      %s16 = int_to_ptr.vmem [resolvable:$true] %s15
      %21 = dma.hbm_to_vmem [thread:$0]  %s0, 256, %s16, [#allocation3], 128, 128, 8
    $region5: #{tpu_custom_call.1} parent=1 // pred_fallthru
      _
    // Predicated region
    $region6: #{tpu_custom_call.1} parent=1 // pred_check
      _
    $region7: #{tpu_custom_call.1} parent=1 // pred_check_branch
      %23 = sbr.rel (0) target = $region9
    $region8: #{tpu_custom_call.1} parent=1 // pred_region
      %s25 = ssub.s32 128, 128
      %26 = vsyncadd [#allocation6], %s25
      %s28 = sshll.u32 [#allocation5], 4
      %s29 = int_to_ptr.vmem [resolvable:$true] %s28
      %31 = dma.hbm_to_vmem [thread:$0]  %s1, 128, %s29, [#allocation6]
    $region9: #{tpu_custom_call.1} parent=1 // pred_fallthru
      _
    // Predicated region
    $region10: #{tpu_custom_call.1} parent=1 // pred_check
      _
    $region11: #{tpu_custom_call.1} parent=1 // pred_check_branch
      %33 = sbr.rel (0) target = $region13
    $region12: #{tpu_custom_call.1} parent=1 // pred_region
      %34 = dma.done [#allocation3], 256
    $region13: #{tpu_custom_call.1} parent=1 // pred_fallthru
      _
    // Predicated region
    $region14: #{tpu_custom_call.1} parent=1 // pred_check
      _
    $region15: #{tpu_custom_call.1} parent=1 // pred_check_branch
      %36 = sbr.rel (0) target = $region17
    $region16: #{tpu_custom_call.1} parent=1 // pred_region
      %37 = dma.done [#allocation6], 128
    $region17: #{tpu_custom_call.1} parent=1 // pred_fallthru
      _
    %v38 = vld [vmem:[#allocation2] sm:$0xff]
    %v39 = vld [vmem:[#allocation2 + $0x8] sm:$0xff]
    %v40 = vld [vmem:[#allocation5] sm:$0xff]
    %v41 = vadd.f32 %v38, %v40
    %v42 = vadd.f32 %v39, %v40
    %43 = vst [vmem:[#allocation7] sm:$0xff] %v41
    %44 = vst [vmem:[#allocation7 + $0x8] sm:$0xff] %v42
    // Predicated region
    $region18: #{tpu_custom_call.1} parent=1 // pred_check
      _
    $region19: #{tpu_custom_call.1} parent=1 // pred_check_branch
      %46 = sbr.rel (0) target = $region21
    $region20: #{tpu_custom_call.1} parent=1 // pred_region
      %s48 = ssub.s32 256, 256
      %49 = vsyncadd [#allocation4], %s48
      %s50 = sshll.u32 [#allocation7], 4
      %s51 = int_to_ptr.vmem [resolvable:$true] %s50
      %56 = dma.vmem_to_hbm [thread:$0]  %s51, 256, %s2, [#allocation4], 128, 128, 8
    $region21: #{tpu_custom_call.1} parent=1 // pred_fallthru
      _
    // Predicated region
    $region22: #{tpu_custom_call.1} parent=1 // pred_check
      _
    $region23: #{tpu_custom_call.1} parent=1 // pred_check_branch
      %58 = sbr.rel (0) target = $region25
    $region24: #{tpu_custom_call.1} parent=1 // pred_region
      %59 = dma.done [#allocation4], 256
    $region25: #{tpu_custom_call.1} parent=1 // pred_fallthru
      _
    %60 = vsyncpa [#allocation3], 1
    %61 = vsyncpa [#allocation6], 1
    %62 = vsyncpa [#allocation4], 1

</llo_original>
